<compile_context>
chip_gen: v6e
topology: v6e:2x2x1
jax: 0.10.0
libtpu: 0.0.40
codegen_flags: <defaults>
</compile_context>

<pallas_src>
import functools

import jax
import jax.numpy as jnp
from jax.experimental import pallas as pl
from jax.experimental.pallas import tpu as pltpu

EPS = 1e-6
LANES = 1024  # lane-dense last dim (multiple of 128 -> unmasked full-width vst)


def _pcen_kernel(x_ref, sm_ref, out_ref, *, neg_alpha, delta, r, delta_pow_r,
                 pow_mode):
    """PCEN elementwise math on one (tile_rows, LANES) VMEM tile.

    All parameters are compile-time Python floats (folded into immediates);
    there is no SMEM scalar traffic.
    """
    # Cast to f32 in-kernel (VPU work hidden under the DMA; no-op for f32 in).
    x = x_ref[...].astype(jnp.float32)
    sm = sm_ref[...].astype(jnp.float32)

    # smooth = (EPS + smoother) ** (-alpha); EPS + smoother > 0 so log is exact.
    smooth = jnp.exp(neg_alpha * jnp.log(EPS + sm))
    base = x * smooth + delta

    # Compile-time specializations of the outer pow: each avoided exp/log pair
    # is one fewer EUP transcendental per element.
    if pow_mode == "identity":        # r == 1
        powed = base
    elif pow_mode == "sqrt":          # r == 0.5 (single EUP sqrt)
        powed = jnp.sqrt(base)
    elif pow_mode == "square":        # r == 2 (pure VPU)
        powed = base * base
    else:                             # general r
        powed = jnp.exp(r * jnp.log(base))

    out_ref[...] = (powed - delta_pow_r).astype(out_ref.dtype)


def _tile_config():
    """Pick (max_tile_rows, vmem_limit_bytes) for the current TPU generation."""
    try:
        vmem_bytes = pltpu.get_tpu_info().vmem_capacity_bytes
    except Exception:
        vmem_bytes = None
    if vmem_bytes is None:
        # Unknown chip: 512-row tiles under the default scoped-VMEM limit
        # (~12 MiB live double-buffered) are known-safe everywhere.
        return 512, None
    if vmem_bytes >= (100 << 20):
        # v5e / v6e: 128 MiB physical VMEM. 2048-row tiles = 8 MiB/buffer,
        # ~48 MiB live with double buffering; raise the scoped limit past it.
        return 2048, 80 << 20
    if vmem_bytes >= (48 << 20):
        # v7x: 64 MiB per TensorCore. 1024-row tiles = ~24 MiB live.
        return 1024, 40 << 20
    # Small-VMEM chips: stay comfortably under the default scoped limit.
    return 256, None


def _pick_tile_rows(rows, max_tile_rows):
    if rows <= max_tile_rows:
        return rows  # single block; block dim equals the full array dim
    # Prefer a sublane-aligned tile that divides rows (no ragged final block).
    for t in range(max_tile_rows, 7, -8):
        if rows % t == 0:
            return t
    return max_tile_rows  # ragged final block (handled, just masked stores)


def pcen_forward(x, smoother, alpha, delta, r):
    assert x.shape == smoother.shape
    orig_shape = x.shape
    out_dtype = x.dtype
    n = x.size

    # NOTE: parameters are concretized to Python floats (they are plain scalar
    # nn.Parameter values in the spec). Do not jit this wrapper with traced
    # alpha/delta/r; switch to scalar prefetch if they must stay traced.
    alpha = float(alpha)
    delta = float(delta)
    r = float(r)

    if r == 1.0:
        pow_mode = "identity"
    elif r == 0.5:
        pow_mode = "sqrt"
    elif r == 2.0:
        pow_mode = "square"
    else:
        pow_mode = "general"

    xf = x.reshape(-1)
    sf = smoother.reshape(-1)

    n_pad = (-n) % LANES
    if n_pad:
        # TODO(synk): a ragged tail (n % 1024 != 0) costs one extra HBM
        # pad+slice pass; a pl.BoundedSlice last block would remove it.
        # Pad value 0 is safe: base = 0 * smooth + delta = delta > 0.
        xf = jnp.pad(xf, (0, n_pad))
        sf = jnp.pad(sf, (0, n_pad))

    rows = (n + n_pad) // LANES
    x2 = xf.reshape(rows, LANES)   # zero-copy reshape when n_pad == 0
    s2 = sf.reshape(rows, LANES)

    max_tile_rows, vmem_limit = _tile_config()
    tile_rows = _pick_tile_rows(rows, max_tile_rows)
    grid = (pl.cdiv(rows, tile_rows),)

    kernel = functools.partial(
        _pcen_kernel,
        neg_alpha=-alpha,
        delta=delta,
        r=r,
        delta_pow_r=delta ** r,
        pow_mode=pow_mode,
    )

    out2 = pl.pallas_call(
        kernel,
        out_shape=jax.ShapeDtypeStruct((rows, LANES), out_dtype),
        grid=grid,
        in_specs=[
            pl.BlockSpec((tile_rows, LANES), lambda i: (i, 0)),  # x tile
            pl.BlockSpec((tile_rows, LANES), lambda i: (i, 0)),  # smoother tile
        ],
        out_specs=pl.BlockSpec((tile_rows, LANES), lambda i: (i, 0)),
        compiler_params=pltpu.CompilerParams(
            # "parallel" lets megacore-capable chips shard the row axis across
            # TensorCores; harmless on single-TC chips.
            dimension_semantics=("parallel",),
            vmem_limit_bytes=vmem_limit,
        ),
    )(x2, s2)

    if n_pad:
        return out2.reshape(-1)[:n].reshape(orig_shape)
    return out2.reshape(orig_shape)


def pcen_reference(x, smoother, alpha, delta, r):
    smooth = (EPS + smoother) ** (-alpha)
    return (x * smooth + delta) ** r - delta ** r


if __name__ == "__main__":
    # Deterministic parameter init (matches the PCEN module defaults).
    alpha = 0.98
    delta = 2.0
    r = 0.5

    key = jax.random.PRNGKey(0)
    kx, ks = jax.random.split(key)
    # Spectrogram-like positive inputs: (B, C, H, W) = (2, 4, 16, 16)
    x = jax.random.uniform(kx, (2, 4, 16, 16), jnp.float32, minval=0.0, maxval=5.0)
    smoother = jax.random.uniform(ks, (2, 4, 16, 16), jnp.float32, minval=0.0, maxval=5.0)

    # r = 0.5 fast path (sqrt specialization), zero-copy slab (2048 % 1024 == 0).
    out = jax.block_until_ready(pcen_forward(x, smoother, alpha, delta, r))
    ref = pcen_reference(x, smoother, alpha, delta, r)
    assert out.shape == x.shape
    assert jnp.allclose(out, ref, atol=1e-5, rtol=1e-5), "mismatch (r=0.5)"

    # General-r path (exp/log) sanity check.
    out_g = jax.block_until_ready(pcen_forward(x, smoother, alpha, delta, 0.3))
    ref_g = pcen_reference(x, smoother, alpha, delta, 0.3)
    assert jnp.allclose(out_g, ref_g, atol=1e-5, rtol=1e-5), "mismatch (r=0.3)"

    # Ragged-size path (n % 1024 != 0) exercises the padded-tail branch.
    xr = jax.random.uniform(kx, (3, 5, 7), jnp.float32, minval=0.0, maxval=5.0)
    sr = jax.random.uniform(ks, (3, 5, 7), jnp.float32, minval=0.0, maxval=5.0)
    out_r = jax.block_until_ready(pcen_forward(xr, sr, alpha, delta, r))
    ref_r = pcen_reference(xr, sr, alpha, delta, r)
    assert jnp.allclose(out_r, ref_r, atol=1e-5, rtol=1e-5), "mismatch (ragged)"

    print("KERNEL_OK")
</pallas_src>

<mosaic_0001>
module attributes {stable_mosaic.version = 11 : i64} {
  func.func @_pcen_kernel(%arg0: i32, %arg1: memref<2x1024xf32, #tpu.memory_space<vmem>>, %arg2: memref<2x1024xf32, #tpu.memory_space<vmem>>, %arg3: memref<2x1024xf32, #tpu.memory_space<vmem>>) attributes {dimension_semantics = [#tpu.dimension_semantics<parallel>], iteration_bounds = array<i64: 1>, scalar_prefetch = 0 : i64, scratch_operands = 0 : i64, tpu.core_type = #tpu.core_type<tc>, window_params = [{transform_indices = @transform_0, window_bounds = array<i64: 2, 1024>}, {transform_indices = @transform_1, window_bounds = array<i64: 2, 1024>}, {transform_indices = @transform_2, window_bounds = array<i64: 2, 1024>}]} {
    %c0 = arith.constant 0 : index
    %c0_0 = arith.constant 0 : index
    %0 = vector.load %arg1[%c0, %c0_0] : memref<2x1024xf32, #tpu.memory_space<vmem>>, vector<2x1024xf32>
    %c0_1 = arith.constant 0 : index
    %c0_2 = arith.constant 0 : index
    %1 = vector.load %arg2[%c0_1, %c0_2] : memref<2x1024xf32, #tpu.memory_space<vmem>>, vector<2x1024xf32>
    %cst = arith.constant 9.99999997E-7 : f32
    %2 = vector.broadcast %cst : f32 to vector<2x1024xf32>
    %3 = arith.addf %2, %1 : vector<2x1024xf32>
    %4 = math.log %3 : vector<2x1024xf32>
    %cst_3 = arith.constant -9.800000e-01 : f32
    %5 = vector.broadcast %cst_3 : f32 to vector<2x1024xf32>
    %6 = arith.mulf %5, %4 : vector<2x1024xf32>
    %7 = math.exp %6 : vector<2x1024xf32>
    %8 = arith.mulf %0, %7 : vector<2x1024xf32>
    %cst_4 = arith.constant 2.000000e+00 : f32
    %9 = vector.broadcast %cst_4 : f32 to vector<2x1024xf32>
    %10 = arith.addf %8, %9 : vector<2x1024xf32>
    %11 = math.sqrt %10 : vector<2x1024xf32>
    %cst_5 = arith.constant 1.41421354 : f32
    %12 = vector.broadcast %cst_5 : f32 to vector<2x1024xf32>
    %13 = arith.subf %11, %12 : vector<2x1024xf32>
    %c0_6 = arith.constant 0 : index
    %c0_7 = arith.constant 0 : index
    %14 = vector.load %arg3[%c0_6, %c0_7] : memref<2x1024xf32, #tpu.memory_space<vmem>>, vector<2x1024xf32>
    tpu.vector_store %arg3[%c0_6, %c0_7], %13 {strides = array<i32>} : memref<2x1024xf32, #tpu.memory_space<vmem>>, vector<2x1024xf32>,
    return
  }
  func.func @transform_0(%arg0: i32) -> (i32, i32) {
    %c0_i32 = arith.constant 0 : i32
    %c0_i32_0 = arith.constant 0 : i32
    return %arg0, %c0_i32 : i32, i32
  }
  func.func @transform_1(%arg0: i32) -> (i32, i32) {
    %c0_i32 = arith.constant 0 : i32
    %c0_i32_0 = arith.constant 0 : i32
    return %arg0, %c0_i32 : i32, i32
  }
  func.func @transform_2(%arg0: i32) -> (i32, i32) {
    %c0_i32 = arith.constant 0 : i32
    %c0_i32_0 = arith.constant 0 : i32
    return %arg0, %c0_i32 : i32, i32
  }
}

</mosaic_0001>

<llo_original>
// kernel: tpu_custom_call.1
$region0: #{tpu_custom_call.1}
  #allocation0 [shape = 'u32[]', space=smem, size = 0x4, offset = 0x4, fixed_abs, tag = 'smem constant byte address 0x4 - core index']
  #allocation1 [shape = 'u32[144,128]{1,0:T(1,128)}', space=vmem, size = 0x12000, scoped, tag = 'internal scratch']
  %s0 = inlined_call_operand.hbm [shape: f32[2,1024], index: 0, kind: input, shape index: {}]
  %s1 = inlined_call_operand.hbm [shape: f32[2,1024], index: 1, kind: input, shape index: {}]
  %s2 = inlined_call_operand.hbm [shape: f32[2,1024], index: 2, kind: output, shape index: {}]
  %s3 = sld [smem:[#allocation0]]
  $region26: #{tpu_custom_call.1} parent=0
    _
  %s5 = ssub.s32 1, %s3
  %s6 = scalar_select 0, %s5, %s3
  $region1: #{tpu_custom_call.1} parent=0
    #allocation2 [shape = 'u8[8192]{0}', space=vmem, size = 0x2000, scoped, tag = 'input window, operand 0, single buffered']
    #allocation3 [shape = 's32[1]{0}', space=sflag, size = 0x4, scoped, tag = 'scoped memory for tpu_custom_call.1']
    #allocation4 [shape = 's32[1]{0}', space=sflag, size = 0x4, scoped, tag = 'scoped memory for tpu_custom_call.1']
    #allocation5 [shape = 'u8[8192]{0}', space=vmem, size = 0x2000, scoped, tag = 'input window, operand 1, single buffered']
    #allocation6 [shape = 's32[1]{0}', space=sflag, size = 0x4, scoped, tag = 'scoped memory for tpu_custom_call.1']
    #allocation7 [shape = 'u8[8192]{0}', space=vmem, size = 0x2000, scoped, tag = 'output window, operand 0, single buffered']
    %7 = vsyncpa [#allocation3], 0
    %8 = vsyncpa [#allocation6], 0
    %9 = vsyncpa [#allocation4], 0
    // Predicated region
    $region2: #{tpu_custom_call.1} parent=1 // pred_check
      _
    $region3: #{tpu_custom_call.1} parent=1 // pred_check_branch
      %11 = sbr.rel (0) target = $region5
    $region4: #{tpu_custom_call.1} parent=1 // pred_region
      %s13 = ssub.s32 256, 256
      %14 = vsyncadd [#allocation3], %s13
      %s16 = sshll.u32 [#allocation2], 4
      %s17 = int_to_ptr.vmem [resolvable:$true] %s16
      %19 = dma.hbm_to_vmem [thread:$0]  %s0, 256, %s17, [#allocation3]
    $region5: #{tpu_custom_call.1} parent=1 // pred_fallthru
      _
    // Predicated region
    $region6: #{tpu_custom_call.1} parent=1 // pred_check
      _
    $region7: #{tpu_custom_call.1} parent=1 // pred_check_branch
      %21 = sbr.rel (0) target = $region9
    $region8: #{tpu_custom_call.1} parent=1 // pred_region
      %s23 = ssub.s32 256, 256
      %24 = vsyncadd [#allocation6], %s23
      %s26 = sshll.u32 [#allocation5], 4
      %s27 = int_to_ptr.vmem [resolvable:$true] %s26
      %29 = dma.hbm_to_vmem [thread:$0]  %s1, 256, %s27, [#allocation6]
    $region9: #{tpu_custom_call.1} parent=1 // pred_fallthru
      _
    // Predicated region
    $region10: #{tpu_custom_call.1} parent=1 // pred_check
      _
    $region11: #{tpu_custom_call.1} parent=1 // pred_check_branch
      %31 = sbr.rel (0) target = $region13
    $region12: #{tpu_custom_call.1} parent=1 // pred_region
      %32 = dma.done [#allocation3], 256
    $region13: #{tpu_custom_call.1} parent=1 // pred_fallthru
      _
    // Predicated region
    $region14: #{tpu_custom_call.1} parent=1 // pred_check
      _
    $region15: #{tpu_custom_call.1} parent=1 // pred_check_branch
      %34 = sbr.rel (0) target = $region17
    $region16: #{tpu_custom_call.1} parent=1 // pred_region
      %35 = dma.done [#allocation6], 256
    $region17: #{tpu_custom_call.1} parent=1 // pred_fallthru
      _
    %v36 = vld [vmem:[#allocation2] sm:$0xff]
    %v37 = vld [vmem:[#allocation2 + $0x8] sm:$0xff]
    %v38 = vld [vmem:[#allocation5] sm:$0xff]
    %v39 = vld [vmem:[#allocation5 + $0x8] sm:$0xff]
    %v40 = vadd.f32 %v38, 1e-06
    %v41 = vadd.f32 %v39, 1e-06
    %v42 = vlog2.pop %v40
    %v43 = vmul.f32 %v42, 0.6931472
    %v44 = vlog2.pop %v41
    %v45 = vmul.f32 %v44, 0.6931472
    %v46 = vmul.f32 %v43, -0.98
    %v47 = vmul.f32 %v45, -0.98
    %v48 = vmul.f32 %v46, 1.442695
    %v49 = vpow.pop %v48
    %v50 = vmul.f32 %v47, 1.442695
    %v51 = vpow.pop %v50
    %v52 = vmul.f32 %v36, %v49
    %v53 = vmul.f32 %v37, %v51
    %v54 = vadd.f32 %v52, 2.0
    %v55 = vadd.f32 %v53, 2.0
    %v56 = vrsqrt.pop %v54
    %v57 = vmul.f32 %v54, %v56
    %vm58 = vcmp.eq.f32.partialorder %v54, inf
    %v59 = vsel %vm58, %v54, %v57
    %vm60 = vcmp.eq.f32.partialorder %v54, 0.0
    %v61 = vand.u32 %v54, 2147483648
    %v62 = vsel %vm60, %v61, %v59
    %v63 = vrsqrt.pop %v55
    %v64 = vmul.f32 %v55, %v63
    %vm65 = vcmp.eq.f32.partialorder %v55, inf
    %v66 = vsel %vm65, %v55, %v64
    %vm67 = vcmp.eq.f32.partialorder %v55, 0.0
    %v68 = vand.u32 %v55, 2147483648
    %v69 = vsel %vm67, %v68, %v66
    %v70 = vsub.f32 %v62, 1.4142135
    %v71 = vsub.f32 %v69, 1.4142135
    %72 = vst [vmem:[#allocation7] sm:$0xff] %v70
    %73 = vst [vmem:[#allocation7 + $0x8] sm:$0xff] %v71
    // Predicated region
    $region18: #{tpu_custom_call.1} parent=1 // pred_check
      _
    $region19: #{tpu_custom_call.1} parent=1 // pred_check_branch
      %75 = sbr.rel (0) target = $region21
    $region20: #{tpu_custom_call.1} parent=1 // pred_region
      %s77 = ssub.s32 256, 256
      %78 = vsyncadd [#allocation4], %s77
      %s80 = sshll.u32 [#allocation7], 4
      %s81 = int_to_ptr.vmem [resolvable:$true] %s80
      %83 = dma.vmem_to_hbm [thread:$0]  %s81, 256, %s2, [#allocation4]
    $region21: #{tpu_custom_call.1} parent=1 // pred_fallthru
      _
    // Predicated region
    $region22: #{tpu_custom_call.1} parent=1 // pred_check
      _
    $region23: #{tpu_custom_call.1} parent=1 // pred_check_branch
      %85 = sbr.rel (0) target = $region25
    $region24: #{tpu_custom_call.1} parent=1 // pred_region
      %86 = dma.done [#allocation4], 256
    $region25: #{tpu_custom_call.1} parent=1 // pred_fallthru
      _
    %87 = vsyncpa [#allocation3], 1
    %88 = vsyncpa [#allocation6], 1
    %89 = vsyncpa [#allocation4], 1

</llo_original>
